<compile_context>
chip_gen: v6e
topology: v6e:2x2x1
jax: 0.10.0
libtpu: 0.0.40
codegen_flags: <defaults>
</compile_context>

<pallas_src>
import functools

import numpy as np
import jax
import jax.numpy as jnp
from jax import lax
from jax.experimental import pallas as pl
from jax.experimental.pallas import tpu as pltpu

LANE = 128   # TPU lane width
SUB = 8      # TPU sublane width


def _round_up(n, m):
    return ((n + m - 1) // m) * m


def _cdiv(a, b):
    return -(-a // b)


# ----------------------------------------------------------------------------
# Kernel: one batch tile of the full autoencoder forward.
#   encoder MLP -> latent z, decoder MLP (cumsum folded into W4'),
#   per-timestep L2 normalization of channels >= 2.
# consts slab rows: 0=b1, 1=b2, 2=b3, 3=b4(folded), 4=mask_xy (1 on c<2).
# ----------------------------------------------------------------------------
def autoencoder_kernel(x_ref, w1_ref, w2_ref, w3_ref, w4_ref,
                       s_ref, st_ref, consts_ref, z_ref, xhat_ref):
    H = w1_ref.shape[1]
    Z = w2_ref.shape[1]
    D = w4_ref.shape[1]

    b1 = consts_ref[0:1, :H]
    b2 = consts_ref[1:2, :Z]
    b3 = consts_ref[2:3, :H]
    b4 = consts_ref[3:4, :D]
    mask_xy = consts_ref[4:5, :D]

    x = x_ref[...]                                            # (TB, D), compute dtype

    # ---- encoder: Linear -> ReLU -> Linear (f32 accumulation) --------------
    h1 = jnp.dot(x, w1_ref[...], preferred_element_type=jnp.float32) + b1
    h1 = jnp.maximum(h1, 0.0)
    z = jnp.dot(h1.astype(w2_ref.dtype), w2_ref[...],
                preferred_element_type=jnp.float32) + b2
    z_ref[...] = z.astype(z_ref.dtype)                        # (TB, Z)

    # ---- decoder: Linear -> ReLU -> Linear (cumsum folded into w4/b4) ------
    h2 = jnp.dot(z.astype(w3_ref.dtype), w3_ref[...],
                 preferred_element_type=jnp.float32) + b3
    h2 = jnp.maximum(h2, 0.0)
    y = jnp.dot(h2.astype(w4_ref.dtype), w4_ref[...],
                preferred_element_type=jnp.float32) + b4      # (TB, D)

    # ---- per-timestep L2 normalization of channels >= 2 ---------------------
    # ssq[b, t] = sum_{c>=2} y[b, t*L+c]^2 ;  inv = 1 / max(norm, 1e-12)
    ssq = jnp.dot(y * y, s_ref[...], preferred_element_type=jnp.float32)  # (TB, T)
    inv = lax.rsqrt(jnp.maximum(ssq, 1e-24))                               # EUP rsqrt
    # scale = inv broadcast onto channels >= 2, 1 on channels < 2.
    scale = jnp.dot(inv, st_ref[...], preferred_element_type=jnp.float32) + mask_xy
    xhat_ref[...] = (y * scale).astype(xhat_ref.dtype)                     # (TB, D)


# ----------------------------------------------------------------------------
# Host-side constant construction (cached, vectorized)
# ----------------------------------------------------------------------------
@functools.lru_cache(maxsize=None)
def _postproc_consts(T, L, action_type="xy"):
    D = T * L
    if action_type != "xy":
        # identity post-processing: no cumsum, no normalization
        return (np.eye(D, dtype=np.float32),
                np.zeros((D, T), np.float32),
                np.zeros((T, D), np.float32),
                np.ones((D,), np.float32))
    t_idx = np.arange(D) // L
    c_idx = np.arange(D) % L
    # M: per-channel lower-triangular cumsum on channels < 2, identity elsewhere.
    same_c = c_idx[:, None] == c_idx[None, :]
    causal = t_idx[:, None] <= t_idx[None, :]
    M = np.where(c_idx[None, :] < 2, same_c & causal,
                 np.eye(D, dtype=bool)).astype(np.float32)
    # S selects channels >= 2 of each timestep; St broadcasts 1/norm back.
    S = ((c_idx[:, None] >= 2)
         & (t_idx[:, None] == np.arange(T)[None, :])).astype(np.float32)
    mask_xy = (c_idx < 2).astype(np.float32)
    return M, S, np.ascontiguousarray(S.T), mask_xy


def prepare_params(params, T, L, compute_dtype=jnp.bfloat16, action_type="xy"):
    """Fold the cumsum operator into the last decoder layer, pack the tiny bias
    constants into one slab, and cast the MXU weights.  Call once; reuse."""
    w1, b1, w2, b2, w3, b3, w4, b4 = params
    D = T * L
    H = int(w1.shape[1])
    Z = int(w2.shape[1])

    M, S, St, mask_xy = _postproc_consts(T, L, action_type)
    # (h2 @ W4 + b4) @ M  ==  h2 @ (W4 @ M) + (b4 @ M)   (done offline, f32)
    w4m = jnp.asarray(w4, jnp.float32) @ jnp.asarray(M)
    b4m = (jnp.asarray(b4, jnp.float32).reshape(1, D) @ jnp.asarray(M)).reshape(-1)

    wmax = max(H, Z, D)
    consts = np.zeros((SUB, wmax), np.float32)
    consts[0, :H] = np.asarray(b1, np.float32).reshape(-1)
    consts[1, :Z] = np.asarray(b2, np.float32).reshape(-1)
    consts[2, :H] = np.asarray(b3, np.float32).reshape(-1)
    consts[3, :D] = np.asarray(b4m, np.float32)
    consts[4, :D] = mask_xy

    return dict(
        T=T, L=L, D=D, H=H, Z=Z, compute_dtype=compute_dtype,
        w1=jnp.asarray(w1, compute_dtype),
        w2=jnp.asarray(w2, compute_dtype),
        w3=jnp.asarray(w3, compute_dtype),
        # Folded layer + epilogue constants stay f32: folded columns are sums of
        # up to T original weights and feed the ill-conditioned cumsum/normalize.
        w4=jnp.asarray(w4m, jnp.float32),
        S=jnp.asarray(S), St=jnp.asarray(St),
        consts=jnp.asarray(consts),
    )


def _choose_tiling(B, block_b):
    """Batch tile TB (multiple of 8 sublanes) and grid size nb.  Prefer an even
    grid of >= 2 steps when the batch allows it, so v7x's two TensorCores both
    get (equal) work under dimension_semantics=("parallel",)."""
    TB = min(_round_up(block_b, SUB), _round_up(B, SUB))
    nb = _cdiv(B, TB)
    if nb == 1 and B >= 2 * SUB:
        nb = 2
    if nb > 1 and nb % 2 == 1:
        nb += 1
    TB = min(TB, _round_up(_cdiv(B, nb), SUB))
    nb = _cdiv(B, TB)
    if nb > 1 and nb % 2 == 1:
        nb += 1          # last step is pure padding; negligible vs. an idle core
    B_pad = nb * TB
    return TB, nb, B_pad


# ----------------------------------------------------------------------------
# Wrapper
# ----------------------------------------------------------------------------
def autoencoder_forward(x, prepared, *, block_b=1024, out_dtype=jnp.float32):
    """x: (B, T, L).  Returns (z, x_hat) with x_hat: (B, T, L)."""
    p = prepared
    B, T, L = x.shape
    assert (T, L) == (p["T"], p["L"])
    D, H, Z = p["D"], p["H"], p["Z"]
    cdt = p["compute_dtype"]

    TB, nb, B_pad = _choose_tiling(B, block_b)

    # True feature width (no lane padding): batch-only pad when needed.
    x_flat = x.reshape(B, D).astype(cdt)            # same as torch .view(B, -1)
    if B_pad != B:
        x_flat = jnp.pad(x_flat, ((0, B_pad - B), (0, 0)))

    batched = lambda i: (i, 0)   # activation tiles walk the batch axis
    const = lambda i: (0, 0)     # weights/constants stay resident in VMEM

    # VMEM budget derived from the actual footprint (double-buffered tiles +
    # resident weights), clamped to stay within every generation's physical VMEM.
    cbytes = jnp.dtype(cdt).itemsize
    obytes = jnp.dtype(out_dtype).itemsize
    per_step = TB * D * cbytes + TB * (Z + D) * obytes
    resident = ((D * H + H * Z + Z * H) * cbytes
                + (H * D + D * T + T * D + SUB * max(H, Z, D)) * 4)
    est = 2 * (per_step + resident) + (2 << 20)
    vmem_limit = int(min(max(2 * est, 16 << 20), 60 << 20))

    grid_spec = pltpu.PrefetchScalarGridSpec(
        num_scalar_prefetch=0,
        grid=(nb,),
        in_specs=[
            pl.BlockSpec((TB, D), batched),          # x (true width)
            pl.BlockSpec((D, H), const),             # w1
            pl.BlockSpec((H, Z), const),             # w2
            pl.BlockSpec((Z, H), const),             # w3
            pl.BlockSpec((H, D), const),             # w4 (cumsum folded, f32)
            pl.BlockSpec((D, T), const),             # S
            pl.BlockSpec((T, D), const),             # St
            pl.BlockSpec((SUB, max(H, Z, D)), const),  # packed b1,b2,b3,b4,mask
        ],
        out_specs=(
            pl.BlockSpec((TB, Z), batched),          # z
            pl.BlockSpec((TB, D), batched),          # x_hat (flat, true width)
        ),
    )

    z_pad, xhat_pad = pl.pallas_call(
        autoencoder_kernel,
        out_shape=(jax.ShapeDtypeStruct((B_pad, Z), out_dtype),
                   jax.ShapeDtypeStruct((B_pad, D), out_dtype)),
        grid_spec=grid_spec,
        compiler_params=pltpu.CompilerParams(
            dimension_semantics=("parallel",),       # megacore-shard the batch axis
            vmem_limit_bytes=vmem_limit),
    )(x_flat, p["w1"], p["w2"], p["w3"], p["w4"], p["S"], p["St"], p["consts"])

    z = z_pad if B_pad == B else z_pad[:B]
    xh = xhat_pad if B_pad == B else xhat_pad[:B]
    return z, xh.reshape(B, T, L)


# ----------------------------------------------------------------------------
# Pure-JAX reference (mirrors the PyTorch forward semantics exactly)
# ----------------------------------------------------------------------------
def reference_forward(x, params):
    (w1, b1, w2, b2, w3, b3, w4, b4) = params
    B, T, L = x.shape
    xf = x.reshape(B, -1)
    h1 = jnp.maximum(xf @ w1 + b1, 0.0)
    z = h1 @ w2 + b2
    h2 = jnp.maximum(z @ w3 + b3, 0.0)
    xh = (h2 @ w4 + b4).reshape(B, T, L)
    xy = jnp.cumsum(xh[:, :, :2], axis=1)
    rest = xh[:, :, 2:]
    nrm = jnp.maximum(jnp.sqrt(jnp.sum(rest * rest, axis=-1, keepdims=True)), 1e-12)
    return z, jnp.concatenate([xy, rest / nrm], axis=-1), nrm


def init_linear(key, fan_in, fan_out):
    """Deterministic nn.Linear-style init: U(-1/sqrt(fan_in), 1/sqrt(fan_in))."""
    kw, kb = jax.random.split(key)
    bound = 1.0 / np.sqrt(fan_in)
    w = jax.random.uniform(kw, (fan_in, fan_out), jnp.float32, -bound, bound)
    b = jax.random.uniform(kb, (1, fan_out), jnp.float32, -bound, bound)
    return w, b


if __name__ == "__main__":
    B, T, L = 16, 8, 4          # small (B, T, L) trajectory batch
    D = T * L                   # 32
    H, Z = 32, 16               # MLP hidden / latent widths

    key = jax.random.PRNGKey(0)
    kx, k1, k2, k3, k4 = jax.random.split(key, 5)

    x = jax.random.normal(kx, (B, T, L), jnp.float32)

    w1, b1 = init_linear(k1, D, H)   # encoder layer 1
    w2, b2 = init_linear(k2, H, Z)   # encoder layer 2
    w3, b3 = init_linear(k3, Z, H)   # decoder layer 1
    w4, b4 = init_linear(k4, H, D)   # decoder layer 2
    params = (w1, b1, w2, b2, w3, b3, w4, b4)

    z_ref, x_hat_ref, nrm_ref = reference_forward(x, params)

    # ---- f32 MXU path: tight-tolerance check, also exercises a 2-step grid ----
    prep_f32 = prepare_params(params, T, L, compute_dtype=jnp.float32)
    z32, xh32 = autoencoder_forward(x, prep_f32, block_b=8)
    jax.block_until_ready((z32, xh32))
    np.testing.assert_allclose(np.asarray(z32), np.asarray(z_ref), rtol=1e-4, atol=1e-4)
    np.testing.assert_allclose(np.asarray(xh32), np.asarray(x_hat_ref), rtol=1e-4, atol=1e-4)

    # ---- default bf16 MXU path (folded W4'/b4' and epilogue constants stay f32):
    #      loose-tolerance validation; normalized channels are compared weighted
    #      by the reference norm (direction of near-zero vectors is ill-posed).
    prep_bf16 = prepare_params(params, T, L)                 # compute_dtype=bf16
    zb, xhb = autoencoder_forward(x, prep_bf16, out_dtype=jnp.bfloat16)
    jax.block_until_ready((zb, xhb))
    zb = np.asarray(zb, np.float32)
    xhb = np.asarray(xhb, np.float32)
    xref = np.asarray(x_hat_ref)
    np.testing.assert_allclose(zb, np.asarray(z_ref), rtol=5e-2, atol=5e-2)
    np.testing.assert_allclose(xhb[:, :, :2], xref[:, :, :2], rtol=5e-2, atol=5e-2)
    w = np.asarray(nrm_ref)
    np.testing.assert_allclose(xhb[:, :, 2:] * w, xref[:, :, 2:] * w, rtol=0, atol=5e-2)

    print("KERNEL_OK")
</pallas_src>

<mosaic_0001>
module attributes {stable_mosaic.version = 11 : i64} {
  func.func @autoencoder_kernel(%arg0: i32, %arg1: memref<8x32xf32, #tpu.memory_space<vmem>>, %arg2: memref<32x32xf32, #tpu.memory_space<vmem>>, %arg3: memref<32x16xf32, #tpu.memory_space<vmem>>, %arg4: memref<16x32xf32, #tpu.memory_space<vmem>>, %arg5: memref<32x32xf32, #tpu.memory_space<vmem>>, %arg6: memref<32x8xf32, #tpu.memory_space<vmem>>, %arg7: memref<8x32xf32, #tpu.memory_space<vmem>>, %arg8: memref<8x32xf32, #tpu.memory_space<vmem>>, %arg9: memref<8x16xf32, #tpu.memory_space<vmem>>, %arg10: memref<8x32xf32, #tpu.memory_space<vmem>>) attributes {dimension_semantics = [#tpu.dimension_semantics<parallel>], iteration_bounds = array<i64: 2>, scalar_prefetch = 0 : i64, scratch_operands = 0 : i64, tpu.core_type = #tpu.core_type<tc>, window_params = [{transform_indices = @transform_0, window_bounds = array<i64: 8, 32>}, {pipeline_mode = #tpu.pipeline_mode<synchronous>, transform_indices = @transform_1, window_bounds = array<i64: 32, 32>}, {pipeline_mode = #tpu.pipeline_mode<synchronous>, transform_indices = @transform_2, window_bounds = array<i64: 32, 16>}, {pipeline_mode = #tpu.pipeline_mode<synchronous>, transform_indices = @transform_3, window_bounds = array<i64: 16, 32>}, {pipeline_mode = #tpu.pipeline_mode<synchronous>, transform_indices = @transform_4, window_bounds = array<i64: 32, 32>}, {pipeline_mode = #tpu.pipeline_mode<synchronous>, transform_indices = @transform_5, window_bounds = array<i64: 32, 8>}, {pipeline_mode = #tpu.pipeline_mode<synchronous>, transform_indices = @transform_6, window_bounds = array<i64: 8, 32>}, {pipeline_mode = #tpu.pipeline_mode<synchronous>, transform_indices = @transform_7, window_bounds = array<i64: 8, 32>}, {transform_indices = @transform_8, window_bounds = array<i64: 8, 16>}, {transform_indices = @transform_9, window_bounds = array<i64: 8, 32>}]} {
    %c0 = arith.constant 0 : index
    %c0_0 = arith.constant 0 : index
    %0 = vector.load %arg8[%c0, %c0_0] : memref<8x32xf32, #tpu.memory_space<vmem>>, vector<1x32xf32>
    %c1 = arith.constant 1 : index
    %c0_1 = arith.constant 0 : index
    %1 = vector.load %arg8[%c1, %c0_1] : memref<8x32xf32, #tpu.memory_space<vmem>>, vector<1x16xf32>
    %c2 = arith.constant 2 : index
    %c0_2 = arith.constant 0 : index
    %2 = vector.load %arg8[%c2, %c0_2] : memref<8x32xf32, #tpu.memory_space<vmem>>, vector<1x32xf32>
    %c3 = arith.constant 3 : index
    %c0_3 = arith.constant 0 : index
    %3 = vector.load %arg8[%c3, %c0_3] : memref<8x32xf32, #tpu.memory_space<vmem>>, vector<1x32xf32>
    %c4 = arith.constant 4 : index
    %c0_4 = arith.constant 0 : index
    %4 = vector.load %arg8[%c4, %c0_4] : memref<8x32xf32, #tpu.memory_space<vmem>>, vector<1x32xf32>
    %c0_5 = arith.constant 0 : index
    %c0_6 = arith.constant 0 : index
    %5 = vector.load %arg1[%c0_5, %c0_6] : memref<8x32xf32, #tpu.memory_space<vmem>>, vector<8x32xf32>
    %c0_7 = arith.constant 0 : index
    %c0_8 = arith.constant 0 : index
    %6 = vector.load %arg2[%c0_7, %c0_8] : memref<32x32xf32, #tpu.memory_space<vmem>>, vector<32x32xf32>
    %cst = arith.constant dense<0.000000e+00> : vector<8x32xf32>
    %7 = tpu.matmul %5, %6, %cst {dimension_numbers = #tpu.dot_dimension_numbers<[1], [0], [0], [1], [0, 0, 1, 1], [], []>} : vector<8x32xf32>, vector<32x32xf32>, vector<8x32xf32> -> vector<8x32xf32>
    %8 = vector.broadcast %0 : vector<1x32xf32> to vector<8x32xf32>
    %9 = arith.addf %7, %8 : vector<8x32xf32>
    %cst_9 = arith.constant 0.000000e+00 : f32
    %10 = vector.broadcast %cst_9 : f32 to vector<8x32xf32>
    %11 = arith.maximumf %9, %10 : vector<8x32xf32>
    %c0_10 = arith.constant 0 : index
    %c0_11 = arith.constant 0 : index
    %12 = vector.load %arg3[%c0_10, %c0_11] : memref<32x16xf32, #tpu.memory_space<vmem>>, vector<32x16xf32>
    %cst_12 = arith.constant dense<0.000000e+00> : vector<8x16xf32>
    %13 = tpu.matmul %11, %12, %cst_12 {dimension_numbers = #tpu.dot_dimension_numbers<[1], [0], [0], [1], [0, 0, 1, 1], [], []>} : vector<8x32xf32>, vector<32x16xf32>, vector<8x16xf32> -> vector<8x16xf32>
    %14 = vector.broadcast %1 : vector<1x16xf32> to vector<8x16xf32>
    %15 = arith.addf %13, %14 : vector<8x16xf32>
    %c0_13 = arith.constant 0 : index
    %c0_14 = arith.constant 0 : index
    %16 = vector.load %arg9[%c0_13, %c0_14] : memref<8x16xf32, #tpu.memory_space<vmem>>, vector<8x16xf32>
    tpu.vector_store %arg9[%c0_13, %c0_14], %15 {strides = array<i32>} : memref<8x16xf32, #tpu.memory_space<vmem>>, vector<8x16xf32>,
    %c0_15 = arith.constant 0 : index
    %c0_16 = arith.constant 0 : index
    %17 = vector.load %arg4[%c0_15, %c0_16] : memref<16x32xf32, #tpu.memory_space<vmem>>, vector<16x32xf32>
    %cst_17 = arith.constant dense<0.000000e+00> : vector<8x32xf32>
    %18 = tpu.matmul %15, %17, %cst_17 {dimension_numbers = #tpu.dot_dimension_numbers<[1], [0], [0], [1], [0, 0, 1, 1], [], []>} : vector<8x16xf32>, vector<16x32xf32>, vector<8x32xf32> -> vector<8x32xf32>
    %19 = vector.broadcast %2 : vector<1x32xf32> to vector<8x32xf32>
    %20 = arith.addf %18, %19 : vector<8x32xf32>
    %cst_18 = arith.constant 0.000000e+00 : f32
    %21 = vector.broadcast %cst_18 : f32 to vector<8x32xf32>
    %22 = arith.maximumf %20, %21 : vector<8x32xf32>
    %c0_19 = arith.constant 0 : index
    %c0_20 = arith.constant 0 : index
    %23 = vector.load %arg5[%c0_19, %c0_20] : memref<32x32xf32, #tpu.memory_space<vmem>>, vector<32x32xf32>
    %cst_21 = arith.constant dense<0.000000e+00> : vector<8x32xf32>
    %24 = tpu.matmul %22, %23, %cst_21 {dimension_numbers = #tpu.dot_dimension_numbers<[1], [0], [0], [1], [0, 0, 1, 1], [], []>} : vector<8x32xf32>, vector<32x32xf32>, vector<8x32xf32> -> vector<8x32xf32>
    %25 = vector.broadcast %3 : vector<1x32xf32> to vector<8x32xf32>
    %26 = arith.addf %24, %25 : vector<8x32xf32>
    %27 = arith.mulf %26, %26 : vector<8x32xf32>
    %c0_22 = arith.constant 0 : index
    %c0_23 = arith.constant 0 : index
    %28 = vector.load %arg6[%c0_22, %c0_23] : memref<32x8xf32, #tpu.memory_space<vmem>>, vector<32x8xf32>
    %cst_24 = arith.constant dense<0.000000e+00> : vector<8x8xf32>
    %29 = tpu.matmul %27, %28, %cst_24 {dimension_numbers = #tpu.dot_dimension_numbers<[1], [0], [0], [1], [0, 0, 1, 1], [], []>} : vector<8x32xf32>, vector<32x8xf32>, vector<8x8xf32> -> vector<8x8xf32>
    %cst_25 = arith.constant 1.000000e-24 : f32
    %30 = vector.broadcast %cst_25 : f32 to vector<8x8xf32>
    %31 = arith.maximumf %29, %30 : vector<8x8xf32>
    %32 = math.rsqrt %31 : vector<8x8xf32>
    %c0_26 = arith.constant 0 : index
    %c0_27 = arith.constant 0 : index
    %33 = vector.load %arg7[%c0_26, %c0_27] : memref<8x32xf32, #tpu.memory_space<vmem>>, vector<8x32xf32>
    %cst_28 = arith.constant dense<0.000000e+00> : vector<8x32xf32>
    %34 = tpu.matmul %32, %33, %cst_28 {dimension_numbers = #tpu.dot_dimension_numbers<[1], [0], [0], [1], [0, 0, 1, 1], [], []>} : vector<8x8xf32>, vector<8x32xf32>, vector<8x32xf32> -> vector<8x32xf32>
    %35 = vector.broadcast %4 : vector<1x32xf32> to vector<8x32xf32>
    %36 = arith.addf %34, %35 : vector<8x32xf32>
    %37 = arith.mulf %26, %36 : vector<8x32xf32>
    %c0_29 = arith.constant 0 : index
    %c0_30 = arith.constant 0 : index
    %38 = vector.load %arg10[%c0_29, %c0_30] : memref<8x32xf32, #tpu.memory_space<vmem>>, vector<8x32xf32>
    tpu.vector_store %arg10[%c0_29, %c0_30], %37 {strides = array<i32>} : memref<8x32xf32, #tpu.memory_space<vmem>>, vector<8x32xf32>,
    return
  }
  func.func @transform_0(%arg0: i32) -> (i32, i32) {
    %c0_i32 = arith.constant 0 : i32
    %c0_i32_0 = arith.constant 0 : i32
    return %arg0, %c0_i32 : i32, i32
  }
  func.func @transform_1(%arg0: i32) -> (i32, i32) {
    %c0_i32 = arith.constant 0 : i32
    %c0_i32_0 = arith.constant 0 : i32
    %c0_i32_1 = arith.constant 0 : i32
    return %c0_i32, %c0_i32_0 : i32, i32
  }
  func.func @transform_2(%arg0: i32) -> (i32, i32) {
    %c0_i32 = arith.constant 0 : i32
    %c0_i32_0 = arith.constant 0 : i32
    %c0_i32_1 = arith.constant 0 : i32
    return %c0_i32, %c0_i32_0 : i32, i32
  }
  func.func @transform_3(%arg0: i32) -> (i32, i32) {
    %c0_i32 = arith.constant 0 : i32
    %c0_i32_0 = arith.constant 0 : i32
    %c0_i32_1 = arith.constant 0 : i32
    return %c0_i32, %c0_i32_0 : i32, i32
  }
  func.func @transform_4(%arg0: i32) -> (i32, i32) {
    %c0_i32 = arith.constant 0 : i32
    %c0_i32_0 = arith.constant 0 : i32
    %c0_i32_1 = arith.constant 0 : i32
    return %c0_i32, %c0_i32_0 : i32, i32
  }
  func.func @transform_5(%arg0: i32) -> (i32, i32) {
    %c0_i32 = arith.constant 0 : i32
    %c0_i32_0 = arith.constant 0 : i32
    %c0_i32_1 = arith.constant 0 : i32
    return %c0_i32, %c0_i32_0 : i32, i32
  }
  func.func @transform_6(%arg0: i32) -> (i32, i32) {
    %c0_i32 = arith.constant 0 : i32
    %c0_i32_0 = arith.constant 0 : i32
    %c0_i32_1 = arith.constant 0 : i32
    return %c0_i32, %c0_i32_0 : i32, i32
  }
  func.func @transform_7(%arg0: i32) -> (i32, i32) {
    %c0_i32 = arith.constant 0 : i32
    %c0_i32_0 = arith.constant 0 : i32
    %c0_i32_1 = arith.constant 0 : i32
    return %c0_i32, %c0_i32_0 : i32, i32
  }
  func.func @transform_8(%arg0: i32) -> (i32, i32) {
    %c0_i32 = arith.constant 0 : i32
    %c0_i32_0 = arith.constant 0 : i32
    return %arg0, %c0_i32 : i32, i32
  }
  func.func @transform_9(%arg0: i32) -> (i32, i32) {
    %c0_i32 = arith.constant 0 : i32
    %c0_i32_0 = arith.constant 0 : i32
    return %arg0, %c0_i32 : i32, i32
  }
}

</mosaic_0001>

<llo_original>
// kernel: tpu_custom_call.1
$region0: #{tpu_custom_call.1}
  #allocation0 [shape = 'u32[]', space=smem, size = 0x4, offset = 0x4, fixed_abs, tag = 'smem constant byte address 0x4 - core index']
  #allocation1 [shape = 'u32[144,128]{1,0:T(1,128)}', space=vmem, size = 0x12000, scoped, tag = 'internal scratch']
  %s0 = inlined_call_operand.vmem [shape: f32[16,32], index: 0, kind: input, shape index: {}]
  %s1 = inlined_call_operand.vmem [shape: f32[32,32], index: 1, kind: input, shape index: {}]
  %s2 = inlined_call_operand.vmem [shape: f32[32,16], index: 2, kind: input, shape index: {}]
  %s3 = inlined_call_operand.hbm [shape: f32[16,32], index: 3, kind: input, shape index: {}]
  %s4 = inlined_call_operand.vmem [shape: f32[32,32], index: 4, kind: input, shape index: {}]
  %s5 = inlined_call_operand.vmem [shape: f32[32,8], index: 5, kind: input, shape index: {}]
  %s6 = inlined_call_operand.vmem [shape: f32[8,32], index: 6, kind: input, shape index: {}]
  %s7 = inlined_call_operand.hbm [shape: f32[8,32], index: 7, kind: input, shape index: {}]
  %s8 = inlined_call_operand.hbm [shape: f32[16,16], index: 8, kind: output, shape index: {0}]
  %s9 = inlined_call_operand.hbm [shape: f32[16,32], index: 9, kind: output, shape index: {1}]
  %10 = xla_tuple %s8, %s9
  %s11 = sld [smem:[#allocation0]]
  $region81: #{tpu_custom_call.1} parent=0
    _
  %s13 = ssub.s32 1, %s11
  %s14 = scalar_select 0, %s13, %s11
  $region1: #{tpu_custom_call.1} parent=0
    #allocation2 [shape = 'u8[8192]{0}', space=vmem, size = 0x2000, scoped, tag = 'input window, operand 3, single buffered']
    #allocation3 [shape = 's32[2]{0}', space=sflag, size = 0x8, scoped, tag = 'scoped memory for tpu_custom_call.1']
    #allocation4 [shape = 's32[2]{0}', space=sflag, size = 0x8, scoped, tag = 'scoped memory for tpu_custom_call.1']
    #allocation5 [shape = 'u8[4096]{0}', space=vmem, size = 0x1000, scoped, tag = 'input window, operand 7, single buffered']
    #allocation6 [shape = 's32[1]{0}', space=sflag, size = 0x4, scoped, tag = 'scoped memory for tpu_custom_call.1']
    #allocation7 [shape = 'u8[8192]{0}', space=vmem, size = 0x2000, scoped, tag = 'output window, operand 0']
    #allocation8 [shape = 'u8[8192]{0}', space=vmem, size = 0x2000, scoped, tag = 'output window, operand 1']
    #allocation9 [shape = 's32[2]{0}', space=sflag, size = 0x8, scoped, tag = 'scoped memory for tpu_custom_call.1']
    %15 = vsyncpa [#allocation3], 0
    %16 = vsyncpa [#allocation6], 0
    %17 = vsyncpa [#allocation4], 0
    %s18 = scalar_lea.sflag [#allocation4], 1
    %19 = vsyncpa %s18, 0
    %20 = vsyncpa [#allocation9], 0
    %s21 = scalar_lea.sflag [#allocation9], 1
    %22 = vsyncpa %s21, 0
    loop: start=0, step=1, limit=4
    $region2: #{tpu_custom_call.1} parent=1 // loop_pre_header
      _
    $region3: #{tpu_custom_call.1} parent=1 // loop_header
      %s24 = sphi 0, %s28
      %p25 = scmp.ge.s32.totalorder %s24, 4
      %s34 = sphi 0, %s36
      %s37 = sphi 0, %s34
      %s38 = sphi 0, %s37
      %s54 = sphi 0, %s38
      %s58 = sphi 0, %s58
      %s60 = sphi 0, %s58
      %s61 = sphi 0, %s60
      %s75 = sphi 0, %s61
      %s79 = sphi 0, %s79
      %s81 = sphi 0, %s79
      %s82 = sphi 0, %s81
      %s96 = sphi 0, %s82
      %s100 = sphi 0, %s100
      %s102 = sphi 0, %s100
      %s103 = sphi 0, %s102
      %s117 = sphi 0, %s103
      %s121 = sphi 0, %s121
      %s123 = sphi 0, %s121
      %s124 = sphi 0, %s123
      %s138 = sphi 0, %s124
      %s142 = sphi 0, %s142
      %s144 = sphi 0, %s142
      %s145 = sphi 0, %s144
      %s159 = sphi 0, %s145
      %s163 = sphi 0, %s163
      %s165 = sphi 0, %s163
      %s166 = sphi 0, %s165
      %s180 = sphi 0, %s166
      %s184 = sphi 0, %s184
      %s186 = sphi 0, %s184
      %s187 = sphi 0, %s186
      %s201 = sphi 0, %s187
      %s207 = sphi 0, %s209
      %s210 = sphi 0, %s207
      %s211 = sphi 0, %s210
      %s227 = sphi 0, %s211
      %s233 = sphi 0, %s235
      %s236 = sphi 0, %s233
      %s237 = sphi 0, %s236
      %s253 = sphi 0, %s237
    $region4: #{tpu_custom_call.1} parent=1 // loop_header_branch
      %27 = sbr.rel (%p25) target = $region8
    $region5: #{tpu_custom_call.1} parent=1 // loop_body
      %s29 = ssub.s32 %s24, 1
      %s30 = ssub.s32 %s24, 2
      %s31 = sadd.s32 %s24, 1
      %s32 = ssub.s32 %s24, %s31
      %p33 = scmp.eq.s32.totalorder %s32, 0
      %s35 = sadd.s32 %s34, 1
      %s36 = scalar_select %p33, %s34, %s35
      %p39 = pneg %p33
      %p40 = scmp.eq.s32.totalorder %s24, 1
      %p41 = por %p39, %p40
      %p42 = scmp.ne.s32.totalorder %s34, %s37
      %p43 = scmp.eq.s32.totalorder %s24, 0
      %p44 = por %p42, %p43
      %p45 = scmp.ne.s32.totalorder %s34, %s37
      %p46 = scmp.eq.s32.totalorder %s29, 1
      %p47 = por %p45, %p46
      %p48 = scmp.ne.s32.totalorder %s37, %s38
      %p49 = scmp.eq.s32.totalorder %s29, 0
      %p50 = por %p48, %p49
      %p51 = scmp.ne.s32.totalorder %s37, %s38
      %p52 = scmp.eq.s32.totalorder %s30, 1
      %p53 = por %p51, %p52
      %p55 = scmp.ne.s32.totalorder %s38, %s54
      %p56 = scmp.eq.s32.totalorder %s30, 0
      %p57 = por %p55, %p56
      %s59 = sadd.s32 %s58, 1
      %p62 = scmp.eq.s32.totalorder %s24, 1
      %p63 = scmp.ne.s32.totalorder %s58, %s60
      %p64 = scmp.eq.s32.totalorder %s24, 0
      %p65 = por %p63, %p64
      %p66 = scmp.ne.s32.totalorder %s58, %s60
      %p67 = scmp.eq.s32.totalorder %s29, 1
      %p68 = por %p66, %p67
      %p69 = scmp.ne.s32.totalorder %s60, %s61
      %p70 = scmp.eq.s32.totalorder %s29, 0
      %p71 = por %p69, %p70
      %p72 = scmp.ne.s32.totalorder %s60, %s61
      %p73 = scmp.eq.s32.totalorder %s30, 1
      %p74 = por %p72, %p73
      %p76 = scmp.ne.s32.totalorder %s61, %s75
      %p77 = scmp.eq.s32.totalorder %s30, 0
      %p78 = por %p76, %p77
      %s80 = sadd.s32 %s79, 1
      %p83 = scmp.eq.s32.totalorder %s24, 1
      %p84 = scmp.ne.s32.totalorder %s79, %s81
      %p85 = scmp.eq.s32.totalorder %s24, 0
      %p86 = por %p84, %p85
      %p87 = scmp.ne.s32.totalorder %s79, %s81
      %p88 = scmp.eq.s32.totalorder %s29, 1
      %p89 = por %p87, %p88
      %p90 = scmp.ne.s32.totalorder %s81, %s82
      %p91 = scmp.eq.s32.totalorder %s29, 0
      %p92 = por %p90, %p91
      %p93 = scmp.ne.s32.totalorder %s81, %s82
      %p94 = scmp.eq.s32.totalorder %s30, 1
      %p95 = por %p93, %p94
      %p97 = scmp.ne.s32.totalorder %s82, %s96
      %p98 = scmp.eq.s32.totalorder %s30, 0
      %p99 = por %p97, %p98
      %s101 = sadd.s32 %s100, 1
      %p104 = scmp.eq.s32.totalorder %s24, 1
      %p105 = scmp.ne.s32.totalorder %s100, %s102
      %p106 = scmp.eq.s32.totalorder %s24, 0
      %p107 = por %p105, %p106
      %p108 = scmp.ne.s32.totalorder %s100, %s102
      %p109 = scmp.eq.s32.totalorder %s29, 1
      %p110 = por %p108, %p109
      %p111 = scmp.ne.s32.totalorder %s102, %s103
      %p112 = scmp.eq.s32.totalorder %s29, 0
      %p113 = por %p111, %p112
      %p114 = scmp.ne.s32.totalorder %s102, %s103
      %p115 = scmp.eq.s32.totalorder %s30, 1
      %p116 = por %p114, %p115
      %p118 = scmp.ne.s32.totalorder %s103, %s117
      %p119 = scmp.eq.s32.totalorder %s30, 0
      %p120 = por %p118, %p119
      %s122 = sadd.s32 %s121, 1
      %p125 = scmp.eq.s32.totalorder %s24, 1
      %p126 = scmp.ne.s32.totalorder %s121, %s123
      %p127 = scmp.eq.s32.totalorder %s24, 0
      %p128 = por %p126, %p127
      %p129 = scmp.ne.s32.totalorder %s121, %s123
      %p130 = scmp.eq.s32.totalorder %s29, 1
      %p131 = por %p129, %p130
      %p132 = scmp.ne.s32.totalorder %s123, %s124
      %p133 = scmp.eq.s32.totalorder %s29, 0
      %p134 = por %p132, %p133
      %p135 = scmp.ne.s32.totalorder %s123, %s124
      %p136 = scmp.eq.s32.totalorder %s30, 1
      %p137 = por %p135, %p136
      %p139 = scmp.ne.s32.totalorder %s124, %s138
      %p140 = scmp.eq.s32.totalorder %s30, 0
      %p141 = por %p139, %p140
      %s143 = sadd.s32 %s142, 1
      %p146 = scmp.eq.s32.totalorder %s24, 1
      %p147 = scmp.ne.s32.totalorder %s142, %s144
      %p148 = scmp.eq.s32.totalorder %s24, 0
      %p149 = por %p147, %p148
      %p150 = scmp.ne.s32.totalorder %s142, %s144
      %p151 = scmp.eq.s32.totalorder %s29, 1
      %p152 = por %p150, %p151
      %p153 = scmp.ne.s32.totalorder %s144, %s145
      %p154 = scmp.eq.s32.totalorder %s29, 0
      %p155 = por %p153, %p154
      %p156 = scmp.ne.s32.totalorder %s144, %s145
      %p157 = scmp.eq.s32.totalorder %s30, 1
      %p158 = por %p156, %p157
      %p160 = scmp.ne.s32.totalorder %s145, %s159
      %p161 = scmp.eq.s32.totalorder %s30, 0
      %p162 = por %p160, %p161
      %s164 = sadd.s32 %s163, 1
      %p167 = scmp.eq.s32.totalorder %s24, 1
      %p168 = scmp.ne.s32.totalorder %s163, %s165
      %p169 = scmp.eq.s32.totalorder %s24, 0
      %p170 = por %p168, %p169
      %p171 = scmp.ne.s32.totalorder %s163, %s165
      %p172 = scmp.eq.s32.totalorder %s29, 1
      %p173 = por %p171, %p172
      %p174 = scmp.ne.s32.totalorder %s165, %s166
      %p175 = scmp.eq.s32.totalorder %s29, 0
      %p176 = por %p174, %p175
      %p177 = scmp.ne.s32.totalorder %s165, %s166
      %p178 = scmp.eq.s32.totalorder %s30, 1
      %p179 = por %p177, %p178
      %p181 = scmp.ne.s32.totalorder %s166, %s180
      %p182 = scmp.eq.s32.totalorder %s30, 0
      %p183 = por %p181, %p182
      %s185 = sadd.s32 %s184, 1
      %p188 = scmp.eq.s32.totalorder %s24, 1
      %p189 = scmp.ne.s32.totalorder %s184, %s186
      %p190 = scmp.eq.s32.totalorder %s24, 0
      %p191 = por %p189, %p190
      %p192 = scmp.ne.s32.totalorder %s184, %s186
      %p193 = scmp.eq.s32.totalorder %s29, 1
      %p194 = por %p192, %p193
      %p195 = scmp.ne.s32.totalorder %s186, %s187
      %p196 = scmp.eq.s32.totalorder %s29, 0
      %p197 = por %p195, %p196
      %p198 = scmp.ne.s32.totalorder %s186, %s187
      %p199 = scmp.eq.s32.totalorder %s30, 1
      %p200 = por %p198, %p199
      %p202 = scmp.ne.s32.totalorder %s187, %s201
      %p203 = scmp.eq.s32.totalorder %s30, 0
      %p204 = por %p202, %p203
      %s205 = ssub.s32 %s24, %s31
      %p206 = scmp.eq.s32.totalorder %s205, 0
      %s208 = sadd.s32 %s207, 1
      %s209 = scalar_select %p206, %s207, %s208
      %p212 = pneg %p206
      %p213 = scmp.eq.s32.totalorder %s24, 1
      %p214 = por %p212, %p213
      %p215 = scmp.ne.s32.totalorder %s207, %s210
      %p216 = scmp.eq.s32.totalorder %s24, 0
      %p217 = por %p215, %p216
      %p218 = scmp.ne.s32.totalorder %s207, %s210
      %p219 = scmp.eq.s32.totalorder %s29, 1
      %p220 = por %p218, %p219
      %p221 = scmp.ne.s32.totalorder %s210, %s211
      %p222 = scmp.eq.s32.totalorder %s29, 0
      %p223 = por %p221, %p222
      %p224 = scmp.ne.s32.totalorder %s210, %s211
      %p225 = scmp.eq.s32.totalorder %s30, 1
      %p226 = por %p224, %p225
      %p228 = scmp.ne.s32.totalorder %s211, %s227
      %p229 = scmp.eq.s32.totalorder %s30, 0
      %p230 = por %p228, %p229
      %s231 = ssub.s32 %s24, %s31
      %p232 = scmp.eq.s32.totalorder %s231, 0
      %s234 = sadd.s32 %s233, 1
      %s235 = scalar_select %p232, %s233, %s234
      %p238 = pneg %p232
      %p239 = scmp.eq.s32.totalorder %s24, 1
      %p240 = por %p238, %p239
      %p241 = scmp.ne.s32.totalorder %s233, %s236
      %p242 = scmp.eq.s32.totalorder %s24, 0
      %p243 = por %p241, %p242
      %p244 = scmp.ne.s32.totalorder %s233, %s236
      %p245 = scmp.eq.s32.totalorder %s29, 1
      %p246 = por %p244, %p245
      %p247 = scmp.ne.s32.totalorder %s236, %s237
      %p248 = scmp.eq.s32.totalorder %s29, 0
      %p249 = por %p247, %p248
      %p250 = scmp.ne.s32.totalorder %s236, %s237
      %p251 = scmp.eq.s32.totalorder %s30, 1
      %p252 = por %p250, %p251
      %p254 = scmp.ne.s32.totalorder %s237, %s253
      %p255 = scmp.eq.s32.totalorder %s30, 0
      %p256 = por %p254, %p255
      %p257 = scmp.le.s32.totalorder 1, %s24
      %p258 = scmp.lt.s32.totalorder %s24, 3
      %p259 = pnand %p257, %p258
      %p260 = pneg %p259
      // Predicated region
      $region9: #{tpu_custom_call.1} parent=5 // pred_check
        _
      $region10: #{tpu_custom_call.1} parent=5 // pred_check_branch
        %262 = sbr.rel (%p259) target = $region12
      $region11: #{tpu_custom_call.1} parent=5 // pred_region
        %s263 = ssub.s32 %s24, 1
        // Predicated region
        $region13: #{tpu_custom_call.1} parent=11 // pred_check
          %p264 = pneg %p71
        $region14: #{tpu_custom_call.1} parent=11 // pred_check_branch
          %266 = sbr.rel (%p264) target = $region16
        $region15: #{tpu_custom_call.1} parent=11 // pred_region
          _
        $region16: #{tpu_custom_call.1} parent=11 // pred_fallthru
          _
        // Predicated region
        $region17: #{tpu_custom_call.1} parent=11 // pred_check
          %p267 = pneg %p92
        $region18: #{tpu_custom_call.1} parent=11 // pred_check_branch
          %269 = sbr.rel (%p267) target = $region20
        $region19: #{tpu_custom_call.1} parent=11 // pred_region
          _
        $region20: #{tpu_custom_call.1} parent=11 // pred_fallthru
          _
        // Predicated region
        $region21: #{tpu_custom_call.1} parent=11 // pred_check
          %p270 = pneg %p113
        $region22: #{tpu_custom_call.1} parent=11 // pred_check_branch
          %272 = sbr.rel (%p270) target = $region24
        $region23: #{tpu_custom_call.1} parent=11 // pred_region
          %s274 = ssub.s32 256, 256
          %275 = vsyncadd [#allocation3], %s274
          %s276 = sshll.u32 [#allocation2], 4
          %s277 = int_to_ptr.vmem [resolvable:$true] %s276
          %282 = dma.hbm_to_vmem [thread:$0]  %s3, 256, %s277, [#allocation3], 128, 128, 8
        $region24: #{tpu_custom_call.1} parent=11 // pred_fallthru
          _
        // Predicated region
        $region25: #{tpu_custom_call.1} parent=11 // pred_check
          %p283 = pneg %p134
        $region26: #{tpu_custom_call.1} parent=11 // pred_check_branch
          %285 = sbr.rel (%p283) target = $region28
        $region27: #{tpu_custom_call.1} parent=11 // pred_region
          _
        $region28: #{tpu_custom_call.1} parent=11 // pred_fallthru
          _
        // Predicated region
        $region29: #{tpu_custom_call.1} parent=11 // pred_check
          %p286 = pneg %p155
        $region30: #{tpu_custom_call.1} parent=11 // pred_check_branch
          %288 = sbr.rel (%p286) target = $region32
        $region31: #{tpu_custom_call.1} parent=11 // pred_region
          _
        $region32: #{tpu_custom_call.1} parent=11 // pred_fallthru
          _
        // Predicated region
        $region33: #{tpu_custom_call.1} parent=11 // pred_check
          %p289 = pneg %p176
        $region34: #{tpu_custom_call.1} parent=11 // pred_check_branch
          %291 = sbr.rel (%p289) target = $region36
        $region35: #{tpu_custom_call.1} parent=11 // pred_region
          _
        $region36: #{tpu_custom_call.1} parent=11 // pred_fallthru
          _
        // Predicated region
        $region37: #{tpu_custom_call.1} parent=11 // pred_check
          %p292 = pneg %p197
        $region38: #{tpu_custom_call.1} parent=11 // pred_check_branch
          %294 = sbr.rel (%p292) target = $region40
        $region39: #{tpu_custom_call.1} parent=11 // pred_region
          %s296 = ssub.s32 128, 128
          %297 = vsyncadd [#allocation6], %s296
          %s299 = sshll.u32 [#allocation5], 4
          %s300 = int_to_ptr.vmem [resolvable:$true] %s299
          %302 = dma.hbm_to_vmem [thread:$0]  %s7, 128, %s300, [#allocation6]
        $region40: #{tpu_custom_call.1} parent=11 // pred_fallthru
          _
      $region12: #{tpu_custom_call.1} parent=5 // pred_fallthru
        _
      %p303 = scmp.lt.s32.totalorder %s24, 2
      // Predicated region
      $region41: #{tpu_custom_call.1} parent=5 // pred_check
        %p304 = pneg %p303
      $region42: #{tpu_custom_call.1} parent=5 // pred_check_branch
        %306 = sbr.rel (%p304) target = $region44
      $region43: #{tpu_custom_call.1} parent=5 // pred_region
        // Predicated region
        $region45: #{tpu_custom_call.1} parent=43 // pred_check
          %p307 = pneg %p44
        $region46: #{tpu_custom_call.1} parent=43 // pred_check_branch
          %309 = sbr.rel (%p307) target = $region48
        $region47: #{tpu_custom_call.1} parent=43 // pred_region
          %p310 = scmp.lt.s32.totalorder %s24, 1
          %s311 = scalar_select %p310, %s24, 1
          %s312 = smul.addr %s311, 8
          %s313 = scalar_lea.vmem %s0, %s312
        $region48: #{tpu_custom_call.1} parent=43 // pred_fallthru
          _
      $region44: #{tpu_custom_call.1} parent=5 // pred_fallthru
        _
      %p314 = scmp.le.s32.totalorder 1, %s24
      %p315 = scmp.lt.s32.totalorder %s24, 3
      %p316 = pnand %p314, %p315
      %p317 = pneg %p316
      // Predicated region
      $region49: #{tpu_custom_call.1} parent=5 // pred_check
        _
      $region50: #{tpu_custom_call.1} parent=5 // pred_check_branch
        %319 = sbr.rel (%p316) target = $region52
      $region51: #{tpu_custom_call.1} parent=5 // pred_region
        %s320 = ssub.s32 %s24, 1
        // Predicated region
        $region53: #{tpu_custom_call.1} parent=51 // pred_check
          %p321 = pneg %p113
        $region54: #{tpu_custom_call.1} parent=51 // pred_check_branch
          %323 = sbr.rel (%p321) target = $region56
        $region55: #{tpu_custom_call.1} parent=51 // pred_region
          %324 = dma.done [#allocation3], 256
        $region56: #{tpu_custom_call.1} parent=51 // pred_fallthru
          _
        // Predicated region
        $region57: #{tpu_custom_call.1} parent=51 // pred_check
          %p325 = pneg %p197
        $region58: #{tpu_custom_call.1} parent=51 // pred_check_branch
          %327 = sbr.rel (%p325) target = $region60
        $region59: #{tpu_custom_call.1} parent=51 // pred_region
          %328 = dma.done [#allocation6], 128
        $region60: #{tpu_custom_call.1} parent=51 // pred_fallthru
          _
        %p329 = scmp.lt.s32.totalorder %s29, 1
        %s330 = scalar_select %p329, %s29, 1
        %s331 = smul.addr %s330, 8
        %s332 = scalar_lea.vmem %s0, %s331
        %p333 = pneg %p50
        %p334 = pneg %p47
        %p335 = pneg %p71
        %p336 = pneg %p68
        %p337 = pneg %p92
        %p338 = pneg %p89
        %p339 = pneg %p113
        %p340 = pneg %p110
        %p341 = pneg %p134
        %p342 = pneg %p131
        %p343 = pneg %p155
        %p344 = pneg %p152
        %p345 = pneg %p176
        %p346 = pneg %p173
        %p347 = pneg %p197
        %p348 = pneg %p194
        %p349 = pneg %p223
        %p350 = pneg %p220
        %s351 = sand.u32 %s210, 1
        %s352 = scalar_lea.sflag [#allocation4], %s351
        %s353 = sand.u32 %s210, 1
        %s354 = smul.addr %s353, 8
        %s355 = scalar_lea.vmem [#allocation7], %s354
        %p356 = pneg %p249
        %p357 = pneg %p246
        %s358 = sand.u32 %s236, 1
        %s359 = scalar_lea.sflag [#allocation9], %s358
        %s360 = sand.u32 %s236, 1
        %s361 = smul.addr %s360, 8
        %s362 = scalar_lea.vmem [#allocation8], %s361
        %p363 = scmp.lt.s32.totalorder %s29, 1
        %s364 = scalar_select %p363, %s29, 1
        %s365 = smul.addr %s364, 8
        %s366 = scalar_lea.vmem %s0, %s365
        %v367 = vld [vmem:[#allocation5] sm:$0x1]
        %v368 = vld [vmem:[#allocation5 + $0x1] sm:$0x1]
        %v369 = vld [vmem:[#allocation5 + $0x2] sm:$0x1]
        %v370 = vld [vmem:[#allocation5 + $0x3] sm:$0x1]
        %v371 = vld [vmem:[#allocation5 + $0x4] sm:$0x1]
        %v372 = vld [vmem:[%s366] sm:$0xff]
        %v373 = vld [vmem:[%s1] sm:$0xff]
        %v374 = vld [vmem:[%s1 + $0x8] sm:$0xff]
        %v375 = vld [vmem:[%s1 + $0x10] sm:$0xff]
        %v376 = vld [vmem:[%s1 + $0x18] sm:$0xff]
        %v377 = vlaneseq
        %v378 = vshrl.u32 %v377, 7
        %v379 = vsub.s32 0, %v378
        %v380 = vrot.slane %v367, %v379
        %vm381 = vcmask 261120
        %v383 = vsel %vm381, %v372, 0
        %385 = vmatprep.subr.mxu0 0.0
        %386 = vmatpush1.msra.mxu0 0.0
        %387 = vmatprep.subr.mxu0 0.0
        %388 = vmatpush1.msra.mxu0 0.0
        %389 = vmatprep.subr.mxu0 0.0
        %390 = vmatpush1.msra.mxu0 0.0
        %391 = vmatprep.subr.mxu0 0.0
        %392 = vmatpush1.msra.mxu0 0.0
        %393 = vmatprep.subr.mxu0 0.0
        %394 = vmatpush1.msra.mxu0 0.0
        %395 = vmatprep.subr.mxu0 0.0
        %396 = vmatpush1.msra.mxu0 0.0
        %397 = vmatprep.subr.mxu0 0.0
        %398 = vmatpush1.msra.mxu0 0.0
        %399 = vmatprep.subr.mxu0 0.0
        %400 = vmatpush1.msra.mxu0 0.0
        %401 = vmatprep.subr.mxu0 0.0
        %402 = vmatpush1.msra.mxu0 0.0
        %403 = vmatprep.subr.mxu0 0.0
        %404 = vmatpush1.msra.mxu0 0.0
        %405 = vmatprep.subr.mxu0 0.0
        %406 = vmatpush1.msra.mxu0 0.0
        %407 = vmatprep.subr.mxu0 0.0
        %408 = vmatpush1.msra.mxu0 0.0
        %409 = vmatprep.subr.mxu0 0.0
        %410 = vmatpush1.msra.mxu0 %v376
        %411 = vmatprep.subr.mxu0 0.0
        %412 = vmatpush1.msra.mxu0 %v375
        %413 = vmatprep.subr.mxu0 0.0
        %414 = vmatpush1.msra.mxu0 %v374
        %415 = vmatprep.subr.mxu0 0.0
        %416 = vmatpush1.msra.mxu0 %v373
        %417 = vmatprep.subr.mxu0 0.0
        %418 = vmatpush2.msra.mxu0 0.0
        %419 = vmatprep.subr.mxu0 0.0
        %420 = vmatpush2.msra.mxu0 0.0
        %421 = vmatprep.subr.mxu0 0.0
        %422 = vmatpush2.msra.mxu0 0.0
        %423 = vmatprep.subr.mxu0 0.0
        %424 = vmatpush2.msra.mxu0 0.0
        %425 = vmatprep.subr.mxu0 0.0
        %426 = vmatpush2.msra.mxu0 0.0
        %427 = vmatprep.subr.mxu0 0.0
        %428 = vmatpush2.msra.mxu0 0.0
        %429 = vmatprep.subr.mxu0 0.0
        %430 = vmatpush2.msra.mxu0 0.0
        %431 = vmatprep.subr.mxu0 0.0
        %432 = vmatpush2.msra.mxu0 0.0
        %433 = vmatprep.subr.mxu0 0.0
        %434 = vmatpush2.msra.mxu0 0.0
        %435 = vmatprep.subr.mxu0 0.0
        %436 = vmatpush2.msra.mxu0 0.0
        %437 = vmatprep.subr.mxu0 0.0
        %438 = vmatpush2.msra.mxu0 0.0
        %439 = vmatprep.subr.mxu0 0.0
        %440 = vmatpush2.msra.mxu0 0.0
        %441 = vmatprep.subr.mxu0 0.0
        %442 = vmatpush2.msra.mxu0 0.0
        %443 = vmatprep.subr.mxu0 0.0
        %444 = vmatpush2.msra.mxu0 0.0
        %445 = vmatprep.subr.mxu0 0.0
        %446 = vmatpush2.msra.mxu0 0.0
        %447 = vmatprep.subr.mxu0 0.0
        %448 = vmatpush2.msra.mxu0 0.0
        %449 = vmatprep.mubr.f32.mxu0 0.0
        %450 = vmatmul.mubr.f32.gmra.mxu0 %v383
        %v451 = vpop.f32.mrf.mxu0
        %v452 = vadd.f32 %v380, %v451
        %v453 = vpop.f32.mrf.mxu0
        %454 = vdwg.mxu0
        %v455 = vmax.f32 %v452, 0.0
        %v456 = vld [vmem:[%s2] sm:$0xff]
        %v457 = vld [vmem:[%s2 + $0x8] sm:$0xff]
        %v458 = vld [vmem:[%s2 + $0x10] sm:$0xff]
        %v459 = vld [vmem:[%s2 + $0x18] sm:$0xff]
        %v460 = vlaneseq
        %v461 = vshrl.u32 %v460, 7
        %v462 = vsub.s32 0, %v461
        %v463 = vrot.slane %v368, %v462
        %v465 = vsel %vm381, %v455, 0
        %467 = vmatprep.subr.mxu0 0.0
        %468 = vmatpush1.msra.mxu0 0.0
        %469 = vmatprep.subr.mxu0 0.0
        %470 = vmatpush1.msra.mxu0 0.0
        %471 = vmatprep.subr.mxu0 0.0
        %472 = vmatpush1.msra.mxu0 0.0
        %473 = vmatprep.subr.mxu0 0.0
        %474 = vmatpush1.msra.mxu0 0.0
        %475 = vmatprep.subr.mxu0 0.0
        %476 = vmatpush1.msra.mxu0 0.0
        %477 = vmatprep.subr.mxu0 0.0
        %478 = vmatpush1.msra.mxu0 0.0
        %479 = vmatprep.subr.mxu0 0.0
        %480 = vmatpush1.msra.mxu0 0.0
        %481 = vmatprep.subr.mxu0 0.0
        %482 = vmatpush1.msra.mxu0 0.0
        %483 = vmatprep.subr.mxu0 0.0
        %484 = vmatpush1.msra.mxu0 0.0
        %485 = vmatprep.subr.mxu0 0.0
        %486 = vmatpush1.msra.mxu0 0.0
        %487 = vmatprep.subr.mxu0 0.0
        %488 = vmatpush1.msra.mxu0 0.0
        %489 = vmatprep.subr.mxu0 0.0
        %490 = vmatpush1.msra.mxu0 0.0
        %491 = vmatprep.subr.mxu0 0.0
        %492 = vmatpush1.msra.mxu0 %v459
        %493 = vmatprep.subr.mxu0 0.0
        %494 = vmatpush1.msra.mxu0 %v458
        %495 = vmatprep.subr.mxu0 0.0
        %496 = vmatpush1.msra.mxu0 %v457
        %497 = vmatprep.subr.mxu0 0.0
        %498 = vmatpush1.msra.mxu0 %v456
        %499 = vmatprep.subr.mxu0 0.0
        %500 = vmatpush2.msra.mxu0 0.0
        %501 = vmatprep.subr.mxu0 0.0
        %502 = vmatpush2.msra.mxu0 0.0
        %503 = vmatprep.subr.mxu0 0.0
        %504 = vmatpush2.msra.mxu0 0.0
        %505 = vmatprep.subr.mxu0 0.0
        %506 = vmatpush2.msra.mxu0 0.0
        %507 = vmatprep.subr.mxu0 0.0
        %508 = vmatpush2.msra.mxu0 0.0
        %509 = vmatprep.subr.mxu0 0.0
        %510 = vmatpush2.msra.mxu0 0.0
        %511 = vmatprep.subr.mxu0 0.0
        %512 = vmatpush2.msra.mxu0 0.0
        %513 = vmatprep.subr.mxu0 0.0
        %514 = vmatpush2.msra.mxu0 0.0
        %515 = vmatprep.subr.mxu0 0.0
        %516 = vmatpush2.msra.mxu0 0.0
        %517 = vmatprep.subr.mxu0 0.0
        %518 = vmatpush2.msra.mxu0 0.0
        %519 = vmatprep.subr.mxu0 0.0
        %520 = vmatpush2.msra.mxu0 0.0
        %521 = vmatprep.subr.mxu0 0.0
        %522 = vmatpush2.msra.mxu0 0.0
        %523 = vmatprep.subr.mxu0 0.0
        %524 = vmatpush2.msra.mxu0 0.0
        %525 = vmatprep.subr.mxu0 0.0
        %526 = vmatpush2.msra.mxu0 0.0
        %527 = vmatprep.subr.mxu0 0.0
        %528 = vmatpush2.msra.mxu0 0.0
        %529 = vmatprep.subr.mxu0 0.0
        %530 = vmatpush2.msra.mxu0 0.0
        %531 = vmatprep.mubr.f32.mxu0 0.0
        %532 = vmatmul.mubr.f32.gmra.mxu0 %v465
        %v533 = vpop.f32.mrf.mxu0
        %v534 = vadd.f32 %v463, %v533
        %v535 = vpop.f32.mrf.mxu0
        %536 = vdwg.mxu0
        %vm537 = vcmask 130048
        %538 = vst.msk [vmem:[%s355] sm:$0xff] %vm537, %v534
        %v539 = vld [vmem:[#allocation2] sm:$0xff]
        %v540 = vld [vmem:[#allocation2 + $0x8] sm:$0xff]
        %v541 = vlaneseq
        %v542 = vshrl.u32 %v541, 7
        %v543 = vsub.s32 0, %v542
        %v544 = vrot.slane %v369, %v543
        %v546 = vsel %vm537, %v534, 0
        %548 = vmatprep.subr.mxu0 0.0
        %549 = vmatpush1.msra.mxu0 0.0
        %550 = vmatprep.subr.mxu0 0.0
        %551 = vmatpush1.msra.mxu0 0.0
        %552 = vmatprep.subr.mxu0 0.0
        %553 = vmatpush1.msra.mxu0 0.0
        %554 = vmatprep.subr.mxu0 0.0
        %555 = vmatpush1.msra.mxu0 0.0
        %556 = vmatprep.subr.mxu0 0.0
        %557 = vmatpush1.msra.mxu0 0.0
        %558 = vmatprep.subr.mxu0 0.0
        %559 = vmatpush1.msra.mxu0 0.0
        %560 = vmatprep.subr.mxu0 0.0
        %561 = vmatpush1.msra.mxu0 0.0
        %562 = vmatprep.subr.mxu0 0.0
        %563 = vmatpush1.msra.mxu0 0.0
        %564 = vmatprep.subr.mxu0 0.0
        %565 = vmatpush1.msra.mxu0 0.0
        %566 = vmatprep.subr.mxu0 0.0
        %567 = vmatpush1.msra.mxu0 0.0
        %568 = vmatprep.subr.mxu0 0.0
        %569 = vmatpush1.msra.mxu0 0.0
        %570 = vmatprep.subr.mxu0 0.0
        %571 = vmatpush1.msra.mxu0 0.0
        %572 = vmatprep.subr.mxu0 0.0
        %573 = vmatpush1.msra.mxu0 0.0
        %574 = vmatprep.subr.mxu0 0.0
        %575 = vmatpush1.msra.mxu0 0.0
        %576 = vmatprep.subr.mxu0 0.0
        %577 = vmatpush1.msra.mxu0 %v540
        %578 = vmatprep.subr.mxu0 0.0
        %579 = vmatpush1.msra.mxu0 %v539
        %580 = vmatprep.subr.mxu0 0.0
        %581 = vmatpush2.msra.mxu0 0.0
        %582 = vmatprep.subr.mxu0 0.0
        %583 = vmatpush2.msra.mxu0 0.0
        %584 = vmatprep.subr.mxu0 0.0
        %585 = vmatpush2.msra.mxu0 0.0
        %586 = vmatprep.subr.mxu0 0.0
        %587 = vmatpush2.msra.mxu0 0.0
        %588 = vmatprep.subr.mxu0 0.0
        %589 = vmatpush2.msra.mxu0 0.0
        %590 = vmatprep.subr.mxu0 0.0
        %591 = vmatpush2.msra.mxu0 0.0
        %592 = vmatprep.subr.mxu0 0.0
        %593 = vmatpush2.msra.mxu0 0.0
        %594 = vmatprep.subr.mxu0 0.0
        %595 = vmatpush2.msra.mxu0 0.0
        %596 = vmatprep.subr.mxu0 0.0
        %597 = vmatpush2.msra.mxu0 0.0
        %598 = vmatprep.subr.mxu0 0.0
        %599 = vmatpush2.msra.mxu0 0.0
        %600 = vmatprep.subr.mxu0 0.0
        %601 = vmatpush2.msra.mxu0 0.0
        %602 = vmatprep.subr.mxu0 0.0
        %603 = vmatpush2.msra.mxu0 0.0
        %604 = vmatprep.subr.mxu0 0.0
        %605 = vmatpush2.msra.mxu0 0.0
        %606 = vmatprep.subr.mxu0 0.0
        %607 = vmatpush2.msra.mxu0 0.0
        %608 = vmatprep.subr.mxu0 0.0
        %609 = vmatpush2.msra.mxu0 0.0
        %610 = vmatprep.subr.mxu0 0.0
        %611 = vmatpush2.msra.mxu0 0.0
        %612 = vmatprep.mubr.f32.mxu0 0.0
        %613 = vmatmul.mubr.f32.gmra.mxu0 %v546
        %v614 = vpop.f32.mrf.mxu0
        %v615 = vadd.f32 %v544, %v614
        %v616 = vpop.f32.mrf.mxu0
        %617 = vdwg.mxu0
        %v618 = vmax.f32 %v615, 0.0
        %v619 = vld [vmem:[%s4] sm:$0xff]
        %v620 = vld [vmem:[%s4 + $0x8] sm:$0xff]
        %v621 = vld [vmem:[%s4 + $0x10] sm:$0xff]
        %v622 = vld [vmem:[%s4 + $0x18] sm:$0xff]
        %v623 = vlaneseq
        %v624 = vshrl.u32 %v623, 7
        %v625 = vsub.s32 0, %v624
        %v626 = vrot.slane %v370, %v625
        %v628 = vsel %vm381, %v618, 0
        %630 = vmatprep.subr.mxu0 0.0
        %631 = vmatpush1.msra.mxu0 0.0
        %632 = vmatprep.subr.mxu0 0.0
        %633 = vmatpush1.msra.mxu0 0.0
        %634 = vmatprep.subr.mxu0 0.0
        %635 = vmatpush1.msra.mxu0 0.0
        %636 = vmatprep.subr.mxu0 0.0
        %637 = vmatpush1.msra.mxu0 0.0
        %638 = vmatprep.subr.mxu0 0.0
        %639 = vmatpush1.msra.mxu0 0.0
        %640 = vmatprep.subr.mxu0 0.0
        %641 = vmatpush1.msra.mxu0 0.0
        %642 = vmatprep.subr.mxu0 0.0
        %643 = vmatpush1.msra.mxu0 0.0
        %644 = vmatprep.subr.mxu0 0.0
        %645 = vmatpush1.msra.mxu0 0.0
        %646 = vmatprep.subr.mxu0 0.0
        %647 = vmatpush1.msra.mxu0 0.0
        %648 = vmatprep.subr.mxu0 0.0
        %649 = vmatpush1.msra.mxu0 0.0
        %650 = vmatprep.subr.mxu0 0.0
        %651 = vmatpush1.msra.mxu0 0.0
        %652 = vmatprep.subr.mxu0 0.0
        %653 = vmatpush1.msra.mxu0 0.0
        %654 = vmatprep.subr.mxu0 0.0
        %655 = vmatpush1.msra.mxu0 %v622
        %656 = vmatprep.subr.mxu0 0.0
        %657 = vmatpush1.msra.mxu0 %v621
        %658 = vmatprep.subr.mxu0 0.0
        %659 = vmatpush1.msra.mxu0 %v620
        %660 = vmatprep.subr.mxu0 0.0
        %661 = vmatpush1.msra.mxu0 %v619
        %662 = vmatprep.subr.mxu0 0.0
        %663 = vmatpush2.msra.mxu0 0.0
        %664 = vmatprep.subr.mxu0 0.0
        %665 = vmatpush2.msra.mxu0 0.0
        %666 = vmatprep.subr.mxu0 0.0
        %667 = vmatpush2.msra.mxu0 0.0
        %668 = vmatprep.subr.mxu0 0.0
        %669 = vmatpush2.msra.mxu0 0.0
        %670 = vmatprep.subr.mxu0 0.0
        %671 = vmatpush2.msra.mxu0 0.0
        %672 = vmatprep.subr.mxu0 0.0
        %673 = vmatpush2.msra.mxu0 0.0
        %674 = vmatprep.subr.mxu0 0.0
        %675 = vmatpush2.msra.mxu0 0.0
        %676 = vmatprep.subr.mxu0 0.0
        %677 = vmatpush2.msra.mxu0 0.0
        %678 = vmatprep.subr.mxu0 0.0
        %679 = vmatpush2.msra.mxu0 0.0
        %680 = vmatprep.subr.mxu0 0.0
        %681 = vmatpush2.msra.mxu0 0.0
        %682 = vmatprep.subr.mxu0 0.0
        %683 = vmatpush2.msra.mxu0 0.0
        %684 = vmatprep.subr.mxu0 0.0
        %685 = vmatpush2.msra.mxu0 0.0
        %686 = vmatprep.subr.mxu0 0.0
        %687 = vmatpush2.msra.mxu0 0.0
        %688 = vmatprep.subr.mxu0 0.0
        %689 = vmatpush2.msra.mxu0 0.0
        %690 = vmatprep.subr.mxu0 0.0
        %691 = vmatpush2.msra.mxu0 0.0
        %692 = vmatprep.subr.mxu0 0.0
        %693 = vmatpush2.msra.mxu0 0.0
        %694 = vmatprep.mubr.f32.mxu0 0.0
        %695 = vmatmul.mubr.f32.gmra.mxu0 %v628
        %v696 = vpop.f32.mrf.mxu0
        %v697 = vadd.f32 %v626, %v696
        %v698 = vpop.f32.mrf.mxu0
        %699 = vdwg.mxu0
        %v700 = vmul.f32 %v697, %v697
        %v701 = vld [vmem:[%s5] sm:$0xff]
        %v702 = vld [vmem:[%s5 + $0x8] sm:$0xff]
        %v703 = vld [vmem:[%s5 + $0x10] sm:$0xff]
        %v704 = vld [vmem:[%s5 + $0x18] sm:$0xff]
        %v706 = vsel %vm381, %v700, 0
        %708 = vmatprep.subr.mxu0 0.0
        %709 = vmatpush1.msra.mxu0 0.0
        %710 = vmatprep.subr.mxu0 0.0
        %711 = vmatpush1.msra.mxu0 0.0
        %712 = vmatprep.subr.mxu0 0.0
        %713 = vmatpush1.msra.mxu0 0.0
        %714 = vmatprep.subr.mxu0 0.0
        %715 = vmatpush1.msra.mxu0 0.0
        %716 = vmatprep.subr.mxu0 0.0
        %717 = vmatpush1.msra.mxu0 0.0
        %718 = vmatprep.subr.mxu0 0.0
        %719 = vmatpush1.msra.mxu0 0.0
        %720 = vmatprep.subr.mxu0 0.0
        %721 = vmatpush1.msra.mxu0 0.0
        %722 = vmatprep.subr.mxu0 0.0
        %723 = vmatpush1.msra.mxu0 0.0
        %724 = vmatprep.subr.mxu0 0.0
        %725 = vmatpush1.msra.mxu0 0.0
        %726 = vmatprep.subr.mxu0 0.0
        %727 = vmatpush1.msra.mxu0 0.0
        %728 = vmatprep.subr.mxu0 0.0
        %729 = vmatpush1.msra.mxu0 0.0
        %730 = vmatprep.subr.mxu0 0.0
        %731 = vmatpush1.msra.mxu0 0.0
        %732 = vmatprep.subr.mxu0 0.0
        %733 = vmatpush1.msra.mxu0 %v704
        %734 = vmatprep.subr.mxu0 0.0
        %735 = vmatpush1.msra.mxu0 %v703
        %736 = vmatprep.subr.mxu0 0.0
        %737 = vmatpush1.msra.mxu0 %v702
        %738 = vmatprep.subr.mxu0 0.0
        %739 = vmatpush1.msra.mxu0 %v701
        %740 = vmatprep.subr.mxu0 0.0
        %741 = vmatpush2.msra.mxu0 0.0
        %742 = vmatprep.subr.mxu0 0.0
        %743 = vmatpush2.msra.mxu0 0.0
        %744 = vmatprep.subr.mxu0 0.0
        %745 = vmatpush2.msra.mxu0 0.0
        %746 = vmatprep.subr.mxu0 0.0
        %747 = vmatpush2.msra.mxu0 0.0
        %748 = vmatprep.subr.mxu0 0.0
        %749 = vmatpush2.msra.mxu0 0.0
        %750 = vmatprep.subr.mxu0 0.0
        %751 = vmatpush2.msra.mxu0 0.0
        %752 = vmatprep.subr.mxu0 0.0
        %753 = vmatpush2.msra.mxu0 0.0
        %754 = vmatprep.subr.mxu0 0.0
        %755 = vmatpush2.msra.mxu0 0.0
        %756 = vmatprep.subr.mxu0 0.0
        %757 = vmatpush2.msra.mxu0 0.0
        %758 = vmatprep.subr.mxu0 0.0
        %759 = vmatpush2.msra.mxu0 0.0
        %760 = vmatprep.subr.mxu0 0.0
        %761 = vmatpush2.msra.mxu0 0.0
        %762 = vmatprep.subr.mxu0 0.0
        %763 = vmatpush2.msra.mxu0 0.0
        %764 = vmatprep.subr.mxu0 0.0
        %765 = vmatpush2.msra.mxu0 0.0
        %766 = vmatprep.subr.mxu0 0.0
        %767 = vmatpush2.msra.mxu0 0.0
        %768 = vmatprep.subr.mxu0 0.0
        %769 = vmatpush2.msra.mxu0 0.0
        %770 = vmatprep.subr.mxu0 0.0
        %771 = vmatpush2.msra.mxu0 0.0
        %772 = vmatprep.mubr.f32.mxu0 0.0
        %773 = vmatmul.mubr.f32.gmra.mxu0 %v706
        %v774 = vpop.f32.mrf.mxu0
        %v775 = vadd.f32 0.0, %v774
        %v776 = vpop.f32.mrf.mxu0
        %777 = vdwg.mxu0
        %v778 = vmax.f32 %v775, 1e-24
        %v779 = vrsqrt.pop %v778
        %v780 = vld [vmem:[%s6] sm:$0xff]
        %v781 = vlaneseq
        %v782 = vshrl.u32 %v781, 7
        %v783 = vsub.s32 0, %v782
        %v784 = vrot.slane %v371, %v783
        %vm785 = vcmask 64512
        %v787 = vsel %vm785, %v779, 0
        %789 = vmatprep.subr.mxu0 0.0
        %790 = vmatpush1.msra.mxu0 0.0
        %791 = vmatprep.subr.mxu0 0.0
        %792 = vmatpush1.msra.mxu0 0.0
        %793 = vmatprep.subr.mxu0 0.0
        %794 = vmatpush1.msra.mxu0 0.0
        %795 = vmatprep.subr.mxu0 0.0
        %796 = vmatpush1.msra.mxu0 0.0
        %797 = vmatprep.subr.mxu0 0.0
        %798 = vmatpush1.msra.mxu0 0.0
        %799 = vmatprep.subr.mxu0 0.0
        %800 = vmatpush1.msra.mxu0 0.0
        %801 = vmatprep.subr.mxu0 0.0
        %802 = vmatpush1.msra.mxu0 0.0
        %803 = vmatprep.subr.mxu0 0.0
        %804 = vmatpush1.msra.mxu0 0.0
        %805 = vmatprep.subr.mxu0 0.0
        %806 = vmatpush1.msra.mxu0 0.0
        %807 = vmatprep.subr.mxu0 0.0
        %808 = vmatpush1.msra.mxu0 0.0
        %809 = vmatprep.subr.mxu0 0.0
        %810 = vmatpush1.msra.mxu0 0.0
        %811 = vmatprep.subr.mxu0 0.0
        %812 = vmatpush1.msra.mxu0 0.0
        %813 = vmatprep.subr.mxu0 0.0
        %814 = vmatpush1.msra.mxu0 0.0
        %815 = vmatprep.subr.mxu0 0.0
        %816 = vmatpush1.msra.mxu0 0.0
        %817 = vmatprep.subr.mxu0 0.0
        %818 = vmatpush1.msra.mxu0 0.0
        %819 = vmatprep.subr.mxu0 0.0
        %820 = vmatpush1.msra.mxu0 %v780
        %821 = vmatprep.subr.mxu0 0.0
        %822 = vmatpush2.msra.mxu0 0.0
        %823 = vmatprep.subr.mxu0 0.0
        %824 = vmatpush2.msra.mxu0 0.0
        %825 = vmatprep.subr.mxu0 0.0
        %826 = vmatpush2.msra.mxu0 0.0
        %827 = vmatprep.subr.mxu0 0.0
        %828 = vmatpush2.msra.mxu0 0.0
        %829 = vmatprep.subr.mxu0 0.0
        %830 = vmatpush2.msra.mxu0 0.0
        %831 = vmatprep.subr.mxu0 0.0
        %832 = vmatpush2.msra.mxu0 0.0
        %833 = vmatprep.subr.mxu0 0.0
        %834 = vmatpush2.msra.mxu0 0.0
        %835 = vmatprep.subr.mxu0 0.0
        %836 = vmatpush2.msra.mxu0 0.0
        %837 = vmatprep.subr.mxu0 0.0
        %838 = vmatpush2.msra.mxu0 0.0
        %839 = vmatprep.subr.mxu0 0.0
        %840 = vmatpush2.msra.mxu0 0.0
        %841 = vmatprep.subr.mxu0 0.0
        %842 = vmatpush2.msra.mxu0 0.0
        %843 = vmatprep.subr.mxu0 0.0
        %844 = vmatpush2.msra.mxu0 0.0
        %845 = vmatprep.subr.mxu0 0.0
        %846 = vmatpush2.msra.mxu0 0.0
        %847 = vmatprep.subr.mxu0 0.0
        %848 = vmatpush2.msra.mxu0 0.0
        %849 = vmatprep.subr.mxu0 0.0
        %850 = vmatpush2.msra.mxu0 0.0
        %851 = vmatprep.subr.mxu0 0.0
        %852 = vmatpush2.msra.mxu0 0.0
        %853 = vmatprep.mubr.f32.mxu0 0.0
        %854 = vmatmul.mubr.f32.gmra.mxu0 %v787
        %v855 = vpop.f32.mrf.mxu0
        %v856 = vadd.f32 %v784, %v855
        %v857 = vpop.f32.mrf.mxu0
        %858 = vdwg.mxu0
        %v859 = vmul.f32 %v697, %v856
        %860 = vst.msk [vmem:[%s362] sm:$0xff] %vm381, %v859
        %s861 = sand.u32 %s210, 1
        %s862 = scalar_lea.sflag [#allocation4], %s861
        %s863 = sand.u32 %s210, 1
        %s864 = smul.addr %s863, 8
        %s865 = scalar_lea.vmem [#allocation7], %s864
        %s866 = sand.u32 %s236, 1
        %s867 = scalar_lea.sflag [#allocation9], %s866
        %s868 = sand.u32 %s236, 1
        %s869 = smul.addr %s868, 8
        %s870 = scalar_lea.vmem [#allocation8], %s869
        // Predicated region
        $region61: #{tpu_custom_call.1} parent=51 // pred_check
          %p871 = pneg %p220
        $region62: #{tpu_custom_call.1} parent=51 // pred_check_branch
          %873 = sbr.rel (%p871) target = $region64
        $region63: #{tpu_custom_call.1} parent=51 // pred_region
          %s875 = ssub.s32 128, 128
          %876 = vsyncadd %s862, %s875
          %s877 = smul.addr %s29, 128
          %s878 = scalar_lea.hbm %s8, %s877
          %s880 = sshll.u32 %s865, 4
          %s881 = int_to_ptr.vmem [resolvable:$true] %s880
          %883 = dma.vmem_to_hbm [thread:$0]  %s881, 128, %s878, %s862
        $region64: #{tpu_custom_call.1} parent=51 // pred_fallthru
          _
        // Predicated region
        $region65: #{tpu_custom_call.1} parent=51 // pred_check
          %p884 = pneg %p246
        $region66: #{tpu_custom_call.1} parent=51 // pred_check_branch
          %886 = sbr.rel (%p884) target = $region68
        $region67: #{tpu_custom_call.1} parent=51 // pred_region
          %s888 = ssub.s32 128, 128
          %889 = vsyncadd %s867, %s888
          %s890 = smul.addr %s29, 128
          %s891 = scalar_lea.hbm %s9, %s890
          %s893 = sshll.u32 %s870, 4
          %s894 = int_to_ptr.vmem [resolvable:$true] %s893
          %896 = dma.vmem_to_hbm [thread:$0]  %s894, 128, %s891, %s867
        $region68: #{tpu_custom_call.1} parent=51 // pred_fallthru
          _
      $region52: #{tpu_custom_call.1} parent=5 // pred_fallthru
        _
      %p897 = scmp.le.s32.totalorder 2, %s24
      // Predicated region
      $region69: #{tpu_custom_call.1} parent=5 // pred_check
        %p898 = pneg %p897
      $region70: #{tpu_custom_call.1} parent=5 // pred_check_branch
        %900 = sbr.rel (%p898) target = $region72
      $region71: #{tpu_custom_call.1} parent=5 // pred_region
        %s901 = ssub.s32 %s24, 2
        // Predicated region
        $region73: #{tpu_custom_call.1} parent=71 // pred_check
          %p902 = pneg %p226
        $region74: #{tpu_custom_call.1} parent=71 // pred_check_branch
          %904 = sbr.rel (%p902) target = $region76
        $region75: #{tpu_custom_call.1} parent=71 // pred_region
          %s905 = sand.u32 %s211, 1
          %s906 = scalar_lea.sflag [#allocation4], %s905
          %s907 = sand.u32 %s211, 1
          %s908 = smul.addr %s907, 8
          %s909 = scalar_lea.vmem [#allocation7], %s908
          %910 = dma.done %s906, 128
        $region76: #{tpu_custom_call.1} parent=71 // pred_fallthru
          _
        // Predicated region
        $region77: #{tpu_custom_call.1} parent=71 // pred_check
          %p911 = pneg %p252
        $region78: #{tpu_custom_call.1} parent=71 // pred_check_branch
          %913 = sbr.rel (%p911) target = $region80
        $region79: #{tpu_custom_call.1} parent=71 // pred_region
          %s914 = sand.u32 %s237, 1
          %s915 = scalar_lea.sflag [#allocation9], %s914
          %s916 = sand.u32 %s237, 1
          %s917 = smul.addr %s916, 8
          %s918 = scalar_lea.vmem [#allocation8], %s917
          %919 = dma.done %s915, 128
        $region80: #{tpu_custom_call.1} parent=71 // pred_fallthru
          _
      $region72: #{tpu_custom_call.1} parent=5 // pred_fallthru
        _
    $region6: #{tpu_custom_call.1} parent=1 // loop_footer
      %s28 = sadd.s32 1, %s24
    $region7: #{tpu_custom_call.1} parent=1 // loop_footer_branch
      %23 = sbr.rel target = $region3
    $region8: #{tpu_custom_call.1} parent=1 // loop_exit
      _
    %920 = vsyncpa [#allocation3], 1
    %s921 = scalar_lea.sflag [#allocation3], 1
    %922 = vsyncpa %s921, 1
    %923 = vsyncpa [#allocation6], 1
    %924 = vsyncpa [#allocation4], 1
    %s925 = scalar_lea.sflag [#allocation4], 1
    %926 = vsyncpa %s925, 1
    %927 = vsyncpa [#allocation9], 1
    %s928 = scalar_lea.sflag [#allocation9], 1
    %929 = vsyncpa %s928, 1

</llo_original>
